<compile_context>
chip_gen: v7x
topology: tpu7x:2x2x1
jax: 0.10.0
libtpu: 0.0.40
codegen_flags: <defaults>
</compile_context>

<pallas_src>
import functools

import jax
import jax.numpy as jnp
from jax import lax
from jax.experimental import pallas as pl
from jax.experimental.pallas import tpu as pltpu

_LANES = 128
_MAX_BLOCK_ROWS = 1024  # 1024 x 128 f32 = 512 KiB per block; 2 MiB with in+out double-buffering


def _binarizer_train_kernel(seed_ref, x_ref, o_ref):
    shape = x_ref.shape  # (block_rows, 128)
    # Per-element global counter (wraps in uint32; fine for decorrelation).
    rows = lax.broadcasted_iota(jnp.uint32, shape, 0)
    lanes = lax.broadcasted_iota(jnp.uint32, shape, 1)
    pid = pl.program_id(0).astype(jnp.uint32)
    idx = pid * jnp.uint32(shape[0] * shape[1]) + rows * jnp.uint32(shape[1]) + lanes

    # lowbias32-style integer hash, salted with the seed.
    h = idx + seed_ref[0].astype(jnp.uint32) * jnp.uint32(0x9E3779B9)
    h = h ^ (h >> 16)
    h = h * jnp.uint32(0x21F0AAAD)
    h = h ^ (h >> 15)
    h = h * jnp.uint32(0x735A2D97)
    h = h ^ (h >> 15)

    # uniform in [0, 1) from the top 24 bits
    prob = (h >> 8).astype(jnp.float32) * jnp.float32(1.0 / (1 << 24))

    t = jnp.tanh(x_ref[...].astype(jnp.float32))
    # (1 - t)/2 <= prob  ->  1.0  else 0.0   (i.e. Bernoulli((1 + t)/2))
    o_ref[...] = ((1.0 - t) * 0.5 <= prob).astype(o_ref.dtype)


def _binarizer_eval_kernel(x_ref, o_ref):
    # floor((sign(tanh(x)) + 1)/2) == 1.0 iff x > 0, else 0.0 (including x == 0).
    o_ref[...] = (x_ref[...] > 0).astype(o_ref.dtype)


@functools.partial(jax.jit, static_argnames=("is_train",))
def binarizer(x, is_train: bool, seed: int = 0):
    """Pallas equivalent of Binarizer.forward(x, is_train)."""
    orig_shape = x.shape
    orig_dtype = x.dtype
    n = x.size

    flat = x.reshape(-1)
    lane_pad = (-n) % _LANES
    if lane_pad:
        # Only copies when the element count isn't already lane-aligned.
        flat = jnp.pad(flat, (0, lane_pad))
    rows = flat.shape[0] // _LANES
    x2d = flat.reshape(rows, _LANES)

    if rows <= _MAX_BLOCK_ROWS:
        block_rows = rows               # full array in one block (any row count allowed)
        grid = (1,)
    else:
        block_rows = _MAX_BLOCK_ROWS    # multiple of 8; partial last block masked by Pallas
        grid = (pl.cdiv(rows, _MAX_BLOCK_ROWS),)

    out_shape = jax.ShapeDtypeStruct((rows, _LANES), orig_dtype)
    itemsize = jnp.dtype(orig_dtype).itemsize
    compiler_params = pltpu.CompilerParams(dimension_semantics=("parallel",))

    if is_train:
        seed_arr = jnp.asarray([seed], dtype=jnp.int32)
        y2d = pl.pallas_call(
            _binarizer_train_kernel,
            out_shape=out_shape,
            grid_spec=pltpu.PrefetchScalarGridSpec(
                num_scalar_prefetch=1,
                grid=grid,
                in_specs=[pl.BlockSpec((block_rows, _LANES), lambda i, seed: (i, 0))],
                out_specs=pl.BlockSpec((block_rows, _LANES), lambda i, seed: (i, 0)),
            ),
            compiler_params=compiler_params,
            cost_estimate=pl.CostEstimate(
                flops=10 * n, transcendentals=n, bytes_accessed=2 * n * itemsize),
        )(seed_arr, x2d)
    else:
        y2d = pl.pallas_call(
            _binarizer_eval_kernel,
            out_shape=out_shape,
            grid_spec=pl.GridSpec(
                grid=grid,
                in_specs=[pl.BlockSpec((block_rows, _LANES), lambda i: (i, 0))],
                out_specs=pl.BlockSpec((block_rows, _LANES), lambda i: (i, 0)),
            ),
            compiler_params=compiler_params,
            cost_estimate=pl.CostEstimate(
                flops=2 * n, transcendentals=0, bytes_accessed=2 * n * itemsize),
        )(x2d)

    y_flat = y2d.reshape(-1)
    if lane_pad:
        y_flat = y_flat[:n]
    return y_flat.reshape(orig_shape)


if __name__ == "__main__":
    key = jax.random.PRNGKey(0)
    # NCHW conv-style activation tensor.
    x = jax.random.normal(key, (2, 4, 16, 16), dtype=jnp.float32)

    y_train = jax.block_until_ready(binarizer(x, is_train=True, seed=0))
    y_eval = jax.block_until_ready(binarizer(x, is_train=False))

    # Sanity checks (values are binary, shapes/dtypes preserved).
    assert y_train.shape == x.shape and y_eval.shape == x.shape
    assert y_train.dtype == x.dtype and y_eval.dtype == x.dtype
    assert bool(jnp.all((y_train == 0.0) | (y_train == 1.0)))
    assert bool(jnp.all((y_eval == 0.0) | (y_eval == 1.0)))

    # Eval path must match the analytic reference exactly.
    ref_eval = jnp.floor((jnp.sign(jnp.tanh(x)) + 1.0) * 0.5)
    assert bool(jnp.all(y_eval == ref_eval))

    # Train path: Bernoulli((1 + tanh(x))/2); for N(0,1) inputs the mean should be ~0.5.
    mean_train = float(jnp.mean(y_train))
    assert 0.35 < mean_train < 0.65

    print("KERNEL_OK")
</pallas_src>

<mosaic_0001>
module attributes {stable_mosaic.version = 11 : i64} {
  func.func @_binarizer_train_kernel(%arg0: i32, %arg1: memref<1xi32, #tpu.memory_space<smem>>, %arg2: memref<16x128xf32, #tpu.memory_space<vmem>>, %arg3: memref<16x128xf32, #tpu.memory_space<vmem>>) attributes {dimension_semantics = [#tpu.dimension_semantics<parallel>], iteration_bounds = array<i64: 1>, scalar_prefetch = 1 : i64, scratch_operands = 0 : i64, tpu.core_type = #tpu.core_type<tc>, window_params = [{transform_indices = @transform_0, window_bounds = array<i64: 16, 128>}, {transform_indices = @transform_1, window_bounds = array<i64: 16, 128>}]} {
    %0 = tpu.iota {dimensions = array<i32: 0>} : vector<16x128xi32>
    %1 = tpu.iota {dimensions = array<i32: 1>} : vector<16x128xi32>
    %c2048_i32 = arith.constant 2048 : i32
    %2 = arith.muli %arg0, %c2048_i32 : i32
    %c128_i32 = arith.constant 128 : i32
    %3 = vector.broadcast %c128_i32 : i32 to vector<16x128xi32>
    %4 = arith.muli %0, %3 : vector<16x128xi32>
    %5 = vector.broadcast %2 : i32 to vector<16x128xi32>
    %6 = arith.addi %5, %4 : vector<16x128xi32>
    %7 = arith.addi %6, %1 : vector<16x128xi32>
    %c0 = arith.constant 0 : index
    %8 = memref.load %arg1[%c0] : memref<1xi32, #tpu.memory_space<smem>>
    %c-1640531527_i32 = arith.constant -1640531527 : i32
    %9 = arith.muli %8, %c-1640531527_i32 : i32
    %10 = vector.broadcast %9 : i32 to vector<16x128xi32>
    %11 = arith.addi %7, %10 : vector<16x128xi32>
    %c16_i32 = arith.constant 16 : i32
    %12 = vector.broadcast %c16_i32 : i32 to vector<16x128xi32>
    %13 = arith.shrui %11, %12 : vector<16x128xi32>
    %14 = arith.xori %11, %13 : vector<16x128xi32>
    %c569420461_i32 = arith.constant 569420461 : i32
    %15 = vector.broadcast %c569420461_i32 : i32 to vector<16x128xi32>
    %16 = arith.muli %14, %15 : vector<16x128xi32>
    %c15_i32 = arith.constant 15 : i32
    %17 = vector.broadcast %c15_i32 : i32 to vector<16x128xi32>
    %18 = arith.shrui %16, %17 : vector<16x128xi32>
    %19 = arith.xori %16, %18 : vector<16x128xi32>
    %c1935289751_i32 = arith.constant 1935289751 : i32
    %20 = vector.broadcast %c1935289751_i32 : i32 to vector<16x128xi32>
    %21 = arith.muli %19, %20 : vector<16x128xi32>
    %c15_i32_0 = arith.constant 15 : i32
    %22 = vector.broadcast %c15_i32_0 : i32 to vector<16x128xi32>
    %23 = arith.shrui %21, %22 : vector<16x128xi32>
    %24 = arith.xori %21, %23 : vector<16x128xi32>
    %c8_i32 = arith.constant 8 : i32
    %25 = vector.broadcast %c8_i32 : i32 to vector<16x128xi32>
    %26 = arith.shrui %24, %25 : vector<16x128xi32>
    %27 = arith.uitofp %26 : vector<16x128xi32> to vector<16x128xf32>
    %cst = arith.constant 5.96046448E-8 : f32
    %28 = vector.broadcast %cst : f32 to vector<16x128xf32>
    %29 = arith.mulf %27, %28 : vector<16x128xf32>
    %c0_1 = arith.constant 0 : index
    %c0_2 = arith.constant 0 : index
    %30 = vector.load %arg2[%c0_1, %c0_2] : memref<16x128xf32, #tpu.memory_space<vmem>>, vector<16x128xf32>
    %31 = math.tanh %30 : vector<16x128xf32>
    %cst_3 = arith.constant 1.000000e+00 : f32
    %32 = vector.broadcast %cst_3 : f32 to vector<16x128xf32>
    %33 = arith.subf %32, %31 : vector<16x128xf32>
    %cst_4 = arith.constant 5.000000e-01 : f32
    %34 = vector.broadcast %cst_4 : f32 to vector<16x128xf32>
    %35 = arith.mulf %33, %34 : vector<16x128xf32>
    %36 = arith.cmpf ole, %35, %29 : vector<16x128xf32>
    %37 = arith.extui %36 : vector<16x128xi1> to vector<16x128xi32>
    %38 = arith.sitofp %37 : vector<16x128xi32> to vector<16x128xf32>
    %c0_5 = arith.constant 0 : index
    %c0_6 = arith.constant 0 : index
    %39 = vector.load %arg3[%c0_5, %c0_6] : memref<16x128xf32, #tpu.memory_space<vmem>>, vector<16x128xf32>
    tpu.vector_store %arg3[%c0_5, %c0_6], %38 {strides = array<i32>} : memref<16x128xf32, #tpu.memory_space<vmem>>, vector<16x128xf32>,
    return
  }
  func.func @transform_0(%arg0: i32, %arg1: memref<1xi32, #tpu.memory_space<smem>>) -> (i32, i32) {
    %c0_i32 = arith.constant 0 : i32
    %c0_i32_0 = arith.constant 0 : i32
    return %arg0, %c0_i32 : i32, i32
  }
  func.func @transform_1(%arg0: i32, %arg1: memref<1xi32, #tpu.memory_space<smem>>) -> (i32, i32) {
    %c0_i32 = arith.constant 0 : i32
    %c0_i32_0 = arith.constant 0 : i32
    return %arg0, %c0_i32 : i32, i32
  }
}

</mosaic_0001>

<llo_original>
// kernel: binarizer.1
$region0: #{binarizer.1}
  #allocation0 [shape = 'u32[]', space=smem, size = 0x4, offset = 0x4, fixed_abs, tag = 'smem constant byte address 0x4 - core index']
  #allocation1 [shape = 'u32[144,128]{1,0:T(1,128)}', space=vmem, size = 0x12000, scoped, tag = 'internal scratch']
  #allocation2 [shape = 's32[1]{0}', space=sflag, size = 0x4, scoped, tag = 'scoped memory for binarizer.1']
  #allocation3 [shape = 's32[1]{0:T(128)S(6)}', space=smem, size = 0x200, scoped, tag = 'prefetched SMEM operand 0']
  %s0 = inlined_call_operand.<no memory space> [shape: s32[1], index: 0, kind: input, shape index: {}]
  %s1 = inlined_call_operand.vmem [shape: f32[16,128], index: 1, kind: input, shape index: {}]
  %s2 = inlined_call_operand.vmem [shape: f32[16,128], index: 2, kind: output, shape index: {}]
  %s3 = sld [smem:[#allocation0]]
  $region14: #{binarizer.1} parent=0
    _
  %s5 = ssub.s32 1, %s3
  %s6 = scalar_select 0, %s5, %s3
  %7 = sst [smem:[#allocation3]] %s0
  // Predicated region
  $region2: #{binarizer.1} parent=0 // pred_check
    _
  $region3: #{binarizer.1} parent=0 // pred_check_branch
    %9 = sbr.rel (0) target = $region5
  $region4: #{binarizer.1} parent=0 // pred_region
    _
  $region5: #{binarizer.1} parent=0 // pred_fallthru
    _
  %v10 = vlaneseq
  %v11 = vshrl.u32 %v10, 7
  %v12 = vadd.s32 %v11, 8
  %v13 = vlaneseq
  %v14 = vand.u32 %v13, 127
  %s15 = smul.u32 0, 2048
  %v16 = vmul.u32 %v11, 128
  %v17 = vmul.u32 %v12, 128
  %v18 = vstv %s15
  %v19 = vadd.s32 %v18, %v16
  %v20 = vadd.s32 %v18, %v17
  %v21 = vadd.s32 %v19, %v14
  %v22 = vadd.s32 %v20, %v14
  %s23 = sld [smem:[#allocation3]]
  %s24 = smul.u32 %s23, 2654435769
  %v25 = vstv %s24
  %v26 = vadd.s32 %v21, %v25
  %v27 = vadd.s32 %v22, %v25
  %v28 = vshrl.u32 %v26, 16
  %v29 = vshrl.u32 %v27, 16
  %v30 = vxor.u32 %v26, %v28
  %v31 = vxor.u32 %v27, %v29
  %v32 = vmul.u32 %v30, 569420461
  %v33 = vmul.u32 %v31, 569420461
  %v34 = vshrl.u32 %v32, 15
  %v35 = vshrl.u32 %v33, 15
  %v36 = vxor.u32 %v32, %v34
  %v37 = vxor.u32 %v33, %v35
  %v38 = vmul.u32 %v36, 1935289751
  %v39 = vmul.u32 %v37, 1935289751
  %v40 = vshrl.u32 %v38, 15
  %v41 = vshrl.u32 %v39, 15
  %v42 = vxor.u32 %v38, %v40
  %v43 = vxor.u32 %v39, %v41
  %v44 = vshrl.u32 %v42, 8
  %v45 = vshrl.u32 %v43, 8
  %v46 = vshrl.u32 %v44, 16
  %v47 = vand.u32 %v44, 65535
  %v48 = vcvt.s32.f32 %v46
  %v49 = vmul.f32 %v48, 65536.0
  %v50 = vcvt.s32.f32 %v47
  %v51 = vadd.f32 %v49, %v50
  %v52 = vshrl.u32 %v45, 16
  %v53 = vand.u32 %v45, 65535
  %v54 = vcvt.s32.f32 %v52
  %v55 = vmul.f32 %v54, 65536.0
  %v56 = vcvt.s32.f32 %v53
  %v57 = vadd.f32 %v55, %v56
  %v58 = vmul.f32 %v51, 5.9604645e-08
  %v59 = vmul.f32 %v57, 5.9604645e-08
  %v60 = vld [vmem:[%s1] sm:$0xff]
  %v61 = vld [vmem:[%s1 + $0x8] sm:$0xff]
  %v62 = vtanh.pop %v60
  %v63 = vtanh.pop %v61
  %v64 = vsub.f32 1.0, %v62
  %v65 = vsub.f32 1.0, %v63
  %v66 = vmul.f32 %v64, 0.5
  %v67 = vmul.f32 %v65, 0.5
  %vm68 = vcmp.le.f32.partialorder %v66, %v58
  %vm69 = vcmp.le.f32.partialorder %v67, %v59
  %v70 = vsel %vm68, 1, 0
  %v71 = vsel %vm69, 1, 0
  %v72 = vcvt.s32.f32 %v70
  %v73 = vcvt.s32.f32 %v71
  %74 = vst [vmem:[%s2] sm:$0xff] %v72
  %75 = vst [vmem:[%s2 + $0x8] sm:$0xff] %v73
  // Predicated region
  $region6: #{binarizer.1} parent=0 // pred_check
    _
  $region7: #{binarizer.1} parent=0 // pred_check_branch
    %77 = sbr.rel (0) target = $region9
  $region8: #{binarizer.1} parent=0 // pred_region
    _
  $region9: #{binarizer.1} parent=0 // pred_fallthru
    _
  // Predicated region
  $region10: #{binarizer.1} parent=0 // pred_check
    _
  $region11: #{binarizer.1} parent=0 // pred_check_branch
    %79 = sbr.rel (0) target = $region13
  $region12: #{binarizer.1} parent=0 // pred_region
    _
  $region13: #{binarizer.1} parent=0 // pred_fallthru
    _

</llo_original>
